<compile_context>
chip_gen: v7x
topology: tpu7x:2x2x1
jax: 0.10.0
libtpu: 0.0.40
codegen_flags: <defaults>
</compile_context>

<pallas_src>
import functools

import jax
import jax.numpy as jnp
from jax.experimental import pallas as pl


def lstm_kernel(x_ref, w_ih_ref, w_hh_ref, b_ref, w_lin_ref, b_lin_ref,
                out_ref, *, seq_len, hidden):
    H = hidden
    w_hh = w_hh_ref[...]                       # (H, 4H), resident across all steps

    # Hoisted input projection + bias: one matmul for the whole sequence.
    xwb = (jnp.dot(x_ref[...], w_ih_ref[...],
                   preferred_element_type=jnp.float32)
           + b_ref[...])                       # (L, 4H)

    h = jnp.zeros((1, H), jnp.float32)
    c = jnp.zeros((1, H), jnp.float32)

    # Fully unrolled recurrence (seq_len is a static Python int).
    for t in range(seq_len):
        gates = xwb[t:t + 1, :] + jnp.dot(
            h, w_hh, preferred_element_type=jnp.float32)      # (1, 4H)

        # Two full-width activation passes, then slice the gate quarters.
        sig = jax.nn.sigmoid(gates)
        th = jnp.tanh(gates)
        i_g = sig[:, 0:H]
        f_g = sig[:, H:2 * H]
        g_g = th[:, 2 * H:3 * H]
        o_g = sig[:, 3 * H:4 * H]

        c = f_g * c + i_g * g_g
        h = o_g * jnp.tanh(c)

    out_ref[...] = (jnp.dot(h, w_lin_ref[...],
                            preferred_element_type=jnp.float32)
                    + b_lin_ref[...])


def lstm_forward_pallas(x, w_ih, w_hh, bias, w_lin, b_lin):
    # x: (L, I) float32
    L, I = x.shape
    H = w_hh.shape[0]
    O = w_lin.shape[1]

    full = lambda shape: pl.BlockSpec(shape, lambda: (0,) * len(shape))

    kernel = functools.partial(lstm_kernel, seq_len=L, hidden=H)
    out = pl.pallas_call(
        kernel,
        out_shape=jax.ShapeDtypeStruct((1, O), jnp.float32),
        in_specs=[
            full((L, I)),
            full((I, 4 * H)),
            full((H, 4 * H)),
            full((1, 4 * H)),
            full((H, O)),
            full((1, O)),
        ],
        out_specs=full((1, O)),
    )(x, w_ih, w_hh, bias, w_lin, b_lin)
    return out[0]          # == predictions[-1], shape (O,)


def lstm_forward_ref(x, w_ih, w_hh, bias, w_lin, b_lin):
    """Pure-JAX reference mirroring torch.nn.LSTM + Linear forward (batch=1)."""
    H = w_hh.shape[0]
    h = jnp.zeros((1, H), jnp.float32)
    c = jnp.zeros((1, H), jnp.float32)
    for t in range(x.shape[0]):
        gates = x[t:t + 1] @ w_ih + h @ w_hh + bias
        i = jax.nn.sigmoid(gates[:, 0:H])
        f = jax.nn.sigmoid(gates[:, H:2 * H])
        g = jnp.tanh(gates[:, 2 * H:3 * H])
        o = jax.nn.sigmoid(gates[:, 3 * H:4 * H])
        c = f * c + i * g
        h = o * jnp.tanh(c)
    return (h @ w_lin + b_lin)[0]


if __name__ == "__main__":
    # Small shapes consistent with the module: seq=8, input_size=1,
    # hidden_layer_size=32 (so 4H=128, lane-aligned), output_size=1.
    # TODO(synk): the PyTorch module carries hidden_cell state across calls;
    # here each forward starts from the zero state (same as its initial state).
    L, I, H, O = 8, 1, 32, 1

    key = jax.random.PRNGKey(0)
    ks = jax.random.split(key, 7)
    k = 1.0 / jnp.sqrt(jnp.float32(H))   # PyTorch default uniform(-1/sqrt(H), 1/sqrt(H))

    x = jax.random.normal(ks[0], (L,), jnp.float32).reshape(L, I)

    # LSTM params (pre-transposed to (in, out); biases b_ih + b_hh folded together)
    w_ih = jax.random.uniform(ks[1], (I, 4 * H), jnp.float32, -k, k)
    w_hh = jax.random.uniform(ks[2], (H, 4 * H), jnp.float32, -k, k)
    bias = (jax.random.uniform(ks[3], (1, 4 * H), jnp.float32, -k, k)
            + jax.random.uniform(ks[4], (1, 4 * H), jnp.float32, -k, k))

    # Linear params
    w_lin = jax.random.uniform(ks[5], (H, O), jnp.float32, -k, k)
    b_lin = jax.random.uniform(ks[6], (1, O), jnp.float32, -k, k)

    out = lstm_forward_pallas(x, w_ih, w_hh, bias, w_lin, b_lin)
    out = jax.block_until_ready(out)

    ref = lstm_forward_ref(x, w_ih, w_hh, bias, w_lin, b_lin)
    assert out.shape == (O,)
    assert jnp.allclose(out, ref, atol=1e-5, rtol=1e-5), (out, ref)

    print("KERNEL_OK")
</pallas_src>

<mosaic_0001>
module attributes {stable_mosaic.version = 11 : i64} {
  func.func @lstm_kernel(%arg0: memref<8x1xf32, #tpu.memory_space<vmem>>, %arg1: memref<1x128xf32, #tpu.memory_space<vmem>>, %arg2: memref<32x128xf32, #tpu.memory_space<vmem>>, %arg3: memref<1x128xf32, #tpu.memory_space<vmem>>, %arg4: memref<32x1xf32, #tpu.memory_space<vmem>>, %arg5: memref<1x1xf32, #tpu.memory_space<vmem>>, %arg6: memref<1x1xf32, #tpu.memory_space<vmem>>) attributes {dimension_semantics = [], scalar_prefetch = 0 : i64, scratch_operands = 0 : i64, tpu.core_type = #tpu.core_type<tc>} {
    %c0 = arith.constant 0 : index
    %c0_0 = arith.constant 0 : index
    %0 = vector.load %arg2[%c0, %c0_0] : memref<32x128xf32, #tpu.memory_space<vmem>>, vector<32x128xf32>
    %c0_1 = arith.constant 0 : index
    %c0_2 = arith.constant 0 : index
    %1 = vector.load %arg0[%c0_1, %c0_2] : memref<8x1xf32, #tpu.memory_space<vmem>>, vector<8x1xf32>
    %c0_3 = arith.constant 0 : index
    %c0_4 = arith.constant 0 : index
    %2 = vector.load %arg1[%c0_3, %c0_4] : memref<1x128xf32, #tpu.memory_space<vmem>>, vector<1x128xf32>
    %cst = arith.constant dense<0.000000e+00> : vector<8x128xf32>
    %3 = tpu.matmul %1, %2, %cst {dimension_numbers = #tpu.dot_dimension_numbers<[1], [0], [0], [1], [0, 0, 1, 1], [], []>} : vector<8x1xf32>, vector<1x128xf32>, vector<8x128xf32> -> vector<8x128xf32>
    %c0_5 = arith.constant 0 : index
    %c0_6 = arith.constant 0 : index
    %4 = vector.load %arg3[%c0_5, %c0_6] : memref<1x128xf32, #tpu.memory_space<vmem>>, vector<1x128xf32>
    %5 = vector.broadcast %4 : vector<1x128xf32> to vector<8x128xf32>
    %6 = arith.addf %3, %5 : vector<8x128xf32>
    %cst_7 = arith.constant 0.000000e+00 : f32
    %7 = vector.broadcast %cst_7 : f32 to vector<1x32xf32>
    %cst_8 = arith.constant 0.000000e+00 : f32
    %8 = vector.broadcast %cst_8 : f32 to vector<1x32xf32>
    %9 = vector.extract_strided_slice %6 {offsets = [0, 0], sizes = [1, 128], strides = [1, 1]} : vector<8x128xf32> to vector<1x128xf32>
    %cst_9 = arith.constant dense<0.000000e+00> : vector<1x128xf32>
    %10 = tpu.matmul %7, %0, %cst_9 {dimension_numbers = #tpu.dot_dimension_numbers<[1], [0], [0], [1], [0, 0, 1, 1], [], []>} : vector<1x32xf32>, vector<32x128xf32>, vector<1x128xf32> -> vector<1x128xf32>
    %11 = arith.addf %9, %10 : vector<1x128xf32>
    %12 = arith.negf %11 : vector<1x128xf32>
    %13 = math.exp %12 : vector<1x128xf32>
    %cst_10 = arith.constant 1.000000e+00 : f32
    %14 = vector.broadcast %cst_10 : f32 to vector<1x128xf32>
    %15 = arith.addf %14, %13 : vector<1x128xf32>
    %16 = arith.divf %14, %15 : vector<1x128xf32>
    %17 = math.tanh %11 : vector<1x128xf32>
    %18 = vector.extract_strided_slice %16 {offsets = [0, 0], sizes = [1, 32], strides = [1, 1]} : vector<1x128xf32> to vector<1x32xf32>
    %19 = vector.extract_strided_slice %16 {offsets = [0, 32], sizes = [1, 32], strides = [1, 1]} : vector<1x128xf32> to vector<1x32xf32>
    %20 = vector.extract_strided_slice %17 {offsets = [0, 64], sizes = [1, 32], strides = [1, 1]} : vector<1x128xf32> to vector<1x32xf32>
    %21 = vector.extract_strided_slice %16 {offsets = [0, 96], sizes = [1, 32], strides = [1, 1]} : vector<1x128xf32> to vector<1x32xf32>
    %22 = arith.mulf %19, %8 : vector<1x32xf32>
    %23 = arith.mulf %18, %20 : vector<1x32xf32>
    %24 = arith.addf %22, %23 : vector<1x32xf32>
    %25 = math.tanh %24 : vector<1x32xf32>
    %26 = arith.mulf %21, %25 : vector<1x32xf32>
    %27 = vector.extract_strided_slice %6 {offsets = [1, 0], sizes = [1, 128], strides = [1, 1]} : vector<8x128xf32> to vector<1x128xf32>
    %cst_11 = arith.constant dense<0.000000e+00> : vector<1x128xf32>
    %28 = tpu.matmul %26, %0, %cst_11 {dimension_numbers = #tpu.dot_dimension_numbers<[1], [0], [0], [1], [0, 0, 1, 1], [], []>} : vector<1x32xf32>, vector<32x128xf32>, vector<1x128xf32> -> vector<1x128xf32>
    %29 = arith.addf %27, %28 : vector<1x128xf32>
    %30 = arith.negf %29 : vector<1x128xf32>
    %31 = math.exp %30 : vector<1x128xf32>
    %cst_12 = arith.constant 1.000000e+00 : f32
    %32 = vector.broadcast %cst_12 : f32 to vector<1x128xf32>
    %33 = arith.addf %32, %31 : vector<1x128xf32>
    %34 = arith.divf %32, %33 : vector<1x128xf32>
    %35 = math.tanh %29 : vector<1x128xf32>
    %36 = vector.extract_strided_slice %34 {offsets = [0, 0], sizes = [1, 32], strides = [1, 1]} : vector<1x128xf32> to vector<1x32xf32>
    %37 = vector.extract_strided_slice %34 {offsets = [0, 32], sizes = [1, 32], strides = [1, 1]} : vector<1x128xf32> to vector<1x32xf32>
    %38 = vector.extract_strided_slice %35 {offsets = [0, 64], sizes = [1, 32], strides = [1, 1]} : vector<1x128xf32> to vector<1x32xf32>
    %39 = vector.extract_strided_slice %34 {offsets = [0, 96], sizes = [1, 32], strides = [1, 1]} : vector<1x128xf32> to vector<1x32xf32>
    %40 = arith.mulf %37, %24 : vector<1x32xf32>
    %41 = arith.mulf %36, %38 : vector<1x32xf32>
    %42 = arith.addf %40, %41 : vector<1x32xf32>
    %43 = math.tanh %42 : vector<1x32xf32>
    %44 = arith.mulf %39, %43 : vector<1x32xf32>
    %45 = vector.extract_strided_slice %6 {offsets = [2, 0], sizes = [1, 128], strides = [1, 1]} : vector<8x128xf32> to vector<1x128xf32>
    %cst_13 = arith.constant dense<0.000000e+00> : vector<1x128xf32>
    %46 = tpu.matmul %44, %0, %cst_13 {dimension_numbers = #tpu.dot_dimension_numbers<[1], [0], [0], [1], [0, 0, 1, 1], [], []>} : vector<1x32xf32>, vector<32x128xf32>, vector<1x128xf32> -> vector<1x128xf32>
    %47 = arith.addf %45, %46 : vector<1x128xf32>
    %48 = arith.negf %47 : vector<1x128xf32>
    %49 = math.exp %48 : vector<1x128xf32>
    %cst_14 = arith.constant 1.000000e+00 : f32
    %50 = vector.broadcast %cst_14 : f32 to vector<1x128xf32>
    %51 = arith.addf %50, %49 : vector<1x128xf32>
    %52 = arith.divf %50, %51 : vector<1x128xf32>
    %53 = math.tanh %47 : vector<1x128xf32>
    %54 = vector.extract_strided_slice %52 {offsets = [0, 0], sizes = [1, 32], strides = [1, 1]} : vector<1x128xf32> to vector<1x32xf32>
    %55 = vector.extract_strided_slice %52 {offsets = [0, 32], sizes = [1, 32], strides = [1, 1]} : vector<1x128xf32> to vector<1x32xf32>
    %56 = vector.extract_strided_slice %53 {offsets = [0, 64], sizes = [1, 32], strides = [1, 1]} : vector<1x128xf32> to vector<1x32xf32>
    %57 = vector.extract_strided_slice %52 {offsets = [0, 96], sizes = [1, 32], strides = [1, 1]} : vector<1x128xf32> to vector<1x32xf32>
    %58 = arith.mulf %55, %42 : vector<1x32xf32>
    %59 = arith.mulf %54, %56 : vector<1x32xf32>
    %60 = arith.addf %58, %59 : vector<1x32xf32>
    %61 = math.tanh %60 : vector<1x32xf32>
    %62 = arith.mulf %57, %61 : vector<1x32xf32>
    %63 = vector.extract_strided_slice %6 {offsets = [3, 0], sizes = [1, 128], strides = [1, 1]} : vector<8x128xf32> to vector<1x128xf32>
    %cst_15 = arith.constant dense<0.000000e+00> : vector<1x128xf32>
    %64 = tpu.matmul %62, %0, %cst_15 {dimension_numbers = #tpu.dot_dimension_numbers<[1], [0], [0], [1], [0, 0, 1, 1], [], []>} : vector<1x32xf32>, vector<32x128xf32>, vector<1x128xf32> -> vector<1x128xf32>
    %65 = arith.addf %63, %64 : vector<1x128xf32>
    %66 = arith.negf %65 : vector<1x128xf32>
    %67 = math.exp %66 : vector<1x128xf32>
    %cst_16 = arith.constant 1.000000e+00 : f32
    %68 = vector.broadcast %cst_16 : f32 to vector<1x128xf32>
    %69 = arith.addf %68, %67 : vector<1x128xf32>
    %70 = arith.divf %68, %69 : vector<1x128xf32>
    %71 = math.tanh %65 : vector<1x128xf32>
    %72 = vector.extract_strided_slice %70 {offsets = [0, 0], sizes = [1, 32], strides = [1, 1]} : vector<1x128xf32> to vector<1x32xf32>
    %73 = vector.extract_strided_slice %70 {offsets = [0, 32], sizes = [1, 32], strides = [1, 1]} : vector<1x128xf32> to vector<1x32xf32>
    %74 = vector.extract_strided_slice %71 {offsets = [0, 64], sizes = [1, 32], strides = [1, 1]} : vector<1x128xf32> to vector<1x32xf32>
    %75 = vector.extract_strided_slice %70 {offsets = [0, 96], sizes = [1, 32], strides = [1, 1]} : vector<1x128xf32> to vector<1x32xf32>
    %76 = arith.mulf %73, %60 : vector<1x32xf32>
    %77 = arith.mulf %72, %74 : vector<1x32xf32>
    %78 = arith.addf %76, %77 : vector<1x32xf32>
    %79 = math.tanh %78 : vector<1x32xf32>
    %80 = arith.mulf %75, %79 : vector<1x32xf32>
    %81 = vector.extract_strided_slice %6 {offsets = [4, 0], sizes = [1, 128], strides = [1, 1]} : vector<8x128xf32> to vector<1x128xf32>
    %cst_17 = arith.constant dense<0.000000e+00> : vector<1x128xf32>
    %82 = tpu.matmul %80, %0, %cst_17 {dimension_numbers = #tpu.dot_dimension_numbers<[1], [0], [0], [1], [0, 0, 1, 1], [], []>} : vector<1x32xf32>, vector<32x128xf32>, vector<1x128xf32> -> vector<1x128xf32>
    %83 = arith.addf %81, %82 : vector<1x128xf32>
    %84 = arith.negf %83 : vector<1x128xf32>
    %85 = math.exp %84 : vector<1x128xf32>
    %cst_18 = arith.constant 1.000000e+00 : f32
    %86 = vector.broadcast %cst_18 : f32 to vector<1x128xf32>
    %87 = arith.addf %86, %85 : vector<1x128xf32>
    %88 = arith.divf %86, %87 : vector<1x128xf32>
    %89 = math.tanh %83 : vector<1x128xf32>
    %90 = vector.extract_strided_slice %88 {offsets = [0, 0], sizes = [1, 32], strides = [1, 1]} : vector<1x128xf32> to vector<1x32xf32>
    %91 = vector.extract_strided_slice %88 {offsets = [0, 32], sizes = [1, 32], strides = [1, 1]} : vector<1x128xf32> to vector<1x32xf32>
    %92 = vector.extract_strided_slice %89 {offsets = [0, 64], sizes = [1, 32], strides = [1, 1]} : vector<1x128xf32> to vector<1x32xf32>
    %93 = vector.extract_strided_slice %88 {offsets = [0, 96], sizes = [1, 32], strides = [1, 1]} : vector<1x128xf32> to vector<1x32xf32>
    %94 = arith.mulf %91, %78 : vector<1x32xf32>
    %95 = arith.mulf %90, %92 : vector<1x32xf32>
    %96 = arith.addf %94, %95 : vector<1x32xf32>
    %97 = math.tanh %96 : vector<1x32xf32>
    %98 = arith.mulf %93, %97 : vector<1x32xf32>
    %99 = vector.extract_strided_slice %6 {offsets = [5, 0], sizes = [1, 128], strides = [1, 1]} : vector<8x128xf32> to vector<1x128xf32>
    %cst_19 = arith.constant dense<0.000000e+00> : vector<1x128xf32>
    %100 = tpu.matmul %98, %0, %cst_19 {dimension_numbers = #tpu.dot_dimension_numbers<[1], [0], [0], [1], [0, 0, 1, 1], [], []>} : vector<1x32xf32>, vector<32x128xf32>, vector<1x128xf32> -> vector<1x128xf32>
    %101 = arith.addf %99, %100 : vector<1x128xf32>
    %102 = arith.negf %101 : vector<1x128xf32>
    %103 = math.exp %102 : vector<1x128xf32>
    %cst_20 = arith.constant 1.000000e+00 : f32
    %104 = vector.broadcast %cst_20 : f32 to vector<1x128xf32>
    %105 = arith.addf %104, %103 : vector<1x128xf32>
    %106 = arith.divf %104, %105 : vector<1x128xf32>
    %107 = math.tanh %101 : vector<1x128xf32>
    %108 = vector.extract_strided_slice %106 {offsets = [0, 0], sizes = [1, 32], strides = [1, 1]} : vector<1x128xf32> to vector<1x32xf32>
    %109 = vector.extract_strided_slice %106 {offsets = [0, 32], sizes = [1, 32], strides = [1, 1]} : vector<1x128xf32> to vector<1x32xf32>
    %110 = vector.extract_strided_slice %107 {offsets = [0, 64], sizes = [1, 32], strides = [1, 1]} : vector<1x128xf32> to vector<1x32xf32>
    %111 = vector.extract_strided_slice %106 {offsets = [0, 96], sizes = [1, 32], strides = [1, 1]} : vector<1x128xf32> to vector<1x32xf32>
    %112 = arith.mulf %109, %96 : vector<1x32xf32>
    %113 = arith.mulf %108, %110 : vector<1x32xf32>
    %114 = arith.addf %112, %113 : vector<1x32xf32>
    %115 = math.tanh %114 : vector<1x32xf32>
    %116 = arith.mulf %111, %115 : vector<1x32xf32>
    %117 = vector.extract_strided_slice %6 {offsets = [6, 0], sizes = [1, 128], strides = [1, 1]} : vector<8x128xf32> to vector<1x128xf32>
    %cst_21 = arith.constant dense<0.000000e+00> : vector<1x128xf32>
    %118 = tpu.matmul %116, %0, %cst_21 {dimension_numbers = #tpu.dot_dimension_numbers<[1], [0], [0], [1], [0, 0, 1, 1], [], []>} : vector<1x32xf32>, vector<32x128xf32>, vector<1x128xf32> -> vector<1x128xf32>
    %119 = arith.addf %117, %118 : vector<1x128xf32>
    %120 = arith.negf %119 : vector<1x128xf32>
    %121 = math.exp %120 : vector<1x128xf32>
    %cst_22 = arith.constant 1.000000e+00 : f32
    %122 = vector.broadcast %cst_22 : f32 to vector<1x128xf32>
    %123 = arith.addf %122, %121 : vector<1x128xf32>
    %124 = arith.divf %122, %123 : vector<1x128xf32>
    %125 = math.tanh %119 : vector<1x128xf32>
    %126 = vector.extract_strided_slice %124 {offsets = [0, 0], sizes = [1, 32], strides = [1, 1]} : vector<1x128xf32> to vector<1x32xf32>
    %127 = vector.extract_strided_slice %124 {offsets = [0, 32], sizes = [1, 32], strides = [1, 1]} : vector<1x128xf32> to vector<1x32xf32>
    %128 = vector.extract_strided_slice %125 {offsets = [0, 64], sizes = [1, 32], strides = [1, 1]} : vector<1x128xf32> to vector<1x32xf32>
    %129 = vector.extract_strided_slice %124 {offsets = [0, 96], sizes = [1, 32], strides = [1, 1]} : vector<1x128xf32> to vector<1x32xf32>
    %130 = arith.mulf %127, %114 : vector<1x32xf32>
    %131 = arith.mulf %126, %128 : vector<1x32xf32>
    %132 = arith.addf %130, %131 : vector<1x32xf32>
    %133 = math.tanh %132 : vector<1x32xf32>
    %134 = arith.mulf %129, %133 : vector<1x32xf32>
    %135 = vector.extract_strided_slice %6 {offsets = [7, 0], sizes = [1, 128], strides = [1, 1]} : vector<8x128xf32> to vector<1x128xf32>
    %cst_23 = arith.constant dense<0.000000e+00> : vector<1x128xf32>
    %136 = tpu.matmul %134, %0, %cst_23 {dimension_numbers = #tpu.dot_dimension_numbers<[1], [0], [0], [1], [0, 0, 1, 1], [], []>} : vector<1x32xf32>, vector<32x128xf32>, vector<1x128xf32> -> vector<1x128xf32>
    %137 = arith.addf %135, %136 : vector<1x128xf32>
    %138 = arith.negf %137 : vector<1x128xf32>
    %139 = math.exp %138 : vector<1x128xf32>
    %cst_24 = arith.constant 1.000000e+00 : f32
    %140 = vector.broadcast %cst_24 : f32 to vector<1x128xf32>
    %141 = arith.addf %140, %139 : vector<1x128xf32>
    %142 = arith.divf %140, %141 : vector<1x128xf32>
    %143 = math.tanh %137 : vector<1x128xf32>
    %144 = vector.extract_strided_slice %142 {offsets = [0, 0], sizes = [1, 32], strides = [1, 1]} : vector<1x128xf32> to vector<1x32xf32>
    %145 = vector.extract_strided_slice %142 {offsets = [0, 32], sizes = [1, 32], strides = [1, 1]} : vector<1x128xf32> to vector<1x32xf32>
    %146 = vector.extract_strided_slice %143 {offsets = [0, 64], sizes = [1, 32], strides = [1, 1]} : vector<1x128xf32> to vector<1x32xf32>
    %147 = vector.extract_strided_slice %142 {offsets = [0, 96], sizes = [1, 32], strides = [1, 1]} : vector<1x128xf32> to vector<1x32xf32>
    %148 = arith.mulf %145, %132 : vector<1x32xf32>
    %149 = arith.mulf %144, %146 : vector<1x32xf32>
    %150 = arith.addf %148, %149 : vector<1x32xf32>
    %151 = math.tanh %150 : vector<1x32xf32>
    %152 = arith.mulf %147, %151 : vector<1x32xf32>
    %c0_25 = arith.constant 0 : index
    %c0_26 = arith.constant 0 : index
    %153 = vector.load %arg4[%c0_25, %c0_26] : memref<32x1xf32, #tpu.memory_space<vmem>>, vector<32x1xf32>
    %cst_27 = arith.constant dense<0.000000e+00> : vector<1x1xf32>
    %154 = tpu.matmul %152, %153, %cst_27 {dimension_numbers = #tpu.dot_dimension_numbers<[1], [0], [0], [1], [0, 0, 1, 1], [], []>} : vector<1x32xf32>, vector<32x1xf32>, vector<1x1xf32> -> vector<1x1xf32>
    %c0_28 = arith.constant 0 : index
    %c0_29 = arith.constant 0 : index
    %155 = vector.load %arg5[%c0_28, %c0_29] : memref<1x1xf32, #tpu.memory_space<vmem>>, vector<1x1xf32>
    %156 = arith.addf %154, %155 : vector<1x1xf32>
    %c0_30 = arith.constant 0 : index
    %c0_31 = arith.constant 0 : index
    %157 = vector.load %arg6[%c0_30, %c0_31] : memref<1x1xf32, #tpu.memory_space<vmem>>, vector<1x1xf32>
    tpu.vector_store %arg6[%c0_30, %c0_31], %156 {strides = array<i32>} : memref<1x1xf32, #tpu.memory_space<vmem>>, vector<1x1xf32>,
    return
  }
}

</mosaic_0001>

<llo_original>
// kernel: tpu_custom_call.1
$region0: #{tpu_custom_call.1}
  #allocation0 [shape = 'u32[]', space=smem, size = 0x4, offset = 0x4, fixed_abs, tag = 'smem constant byte address 0x4 - core index']
  #allocation1 [shape = 'u32[144,128]{1,0:T(1,128)}', space=vmem, size = 0x12000, scoped, tag = 'internal scratch']
  #allocation2 [shape = 'f32[1,1]{1,0:T(1,128)S(1)}', space=vmem, size = 0x200, scoped, tag = 'scoped memory for tpu_custom_call.1']
  %s0 = inlined_call_operand.vmem [shape: f32[8,1], index: 0, kind: input, shape index: {}]
  %s1 = inlined_call_operand.vmem [shape: f32[1,128], index: 1, kind: input, shape index: {}]
  %s2 = inlined_call_operand.vmem [shape: f32[32,128], index: 2, kind: input, shape index: {}]
  %s3 = inlined_call_operand.vmem [shape: f32[1,128], index: 3, kind: input, shape index: {}]
  %s4 = inlined_call_operand.vmem [shape: f32[32,1], index: 4, kind: input, shape index: {}]
  %s5 = inlined_call_operand.<no memory space> [shape: f32[1,1], index: 5, kind: input, shape index: {}]
  %s6 = inlined_call_operand.hbm [shape: f32[1,1], index: 6, kind: output, shape index: {}]
  %s7 = sld [smem:[#allocation0]]
  $region34: #{tpu_custom_call.1} parent=0
    _
  %s9 = ssub.s32 1, %s7
  %s10 = scalar_select 0, %s9, %s7
  %v11 = vstv %s5
  %12 = vst [vmem:[#allocation2] sm:$0x1] %v11
  $region1: #{tpu_custom_call.1} parent=0
    #allocation3 [shape = 'u8[512]{0}', space=vmem, size = 0x400, scoped, tag = 'output window, operand 0, single buffered']
    #allocation4 [shape = 's32[1]{0}', space=sflag, size = 0x4, scoped, tag = 'scoped memory for tpu_custom_call.1']
    %13 = vsyncpa [#allocation4], 0
    // Predicated region
    $region2: #{tpu_custom_call.1} parent=1 // pred_check
      _
    $region3: #{tpu_custom_call.1} parent=1 // pred_check_branch
      %15 = sbr.rel (0) target = $region5
    $region4: #{tpu_custom_call.1} parent=1 // pred_region
      _
    $region5: #{tpu_custom_call.1} parent=1 // pred_fallthru
      _
    // Predicated region
    $region6: #{tpu_custom_call.1} parent=1 // pred_check
      _
    $region7: #{tpu_custom_call.1} parent=1 // pred_check_branch
      %17 = sbr.rel (0) target = $region9
    $region8: #{tpu_custom_call.1} parent=1 // pred_region
      _
    $region9: #{tpu_custom_call.1} parent=1 // pred_fallthru
      _
    // Predicated region
    $region10: #{tpu_custom_call.1} parent=1 // pred_check
      _
    $region11: #{tpu_custom_call.1} parent=1 // pred_check_branch
      %19 = sbr.rel (0) target = $region13
    $region12: #{tpu_custom_call.1} parent=1 // pred_region
      _
    $region13: #{tpu_custom_call.1} parent=1 // pred_fallthru
      _
    // Predicated region
    $region14: #{tpu_custom_call.1} parent=1 // pred_check
      _
    $region15: #{tpu_custom_call.1} parent=1 // pred_check_branch
      %21 = sbr.rel (0) target = $region17
    $region16: #{tpu_custom_call.1} parent=1 // pred_region
      _
    $region17: #{tpu_custom_call.1} parent=1 // pred_fallthru
      _
    // Predicated region
    $region18: #{tpu_custom_call.1} parent=1 // pred_check
      _
    $region19: #{tpu_custom_call.1} parent=1 // pred_check_branch
      %23 = sbr.rel (0) target = $region21
    $region20: #{tpu_custom_call.1} parent=1 // pred_region
      _
    $region21: #{tpu_custom_call.1} parent=1 // pred_fallthru
      _
    // Predicated region
    $region22: #{tpu_custom_call.1} parent=1 // pred_check
      _
    $region23: #{tpu_custom_call.1} parent=1 // pred_check_branch
      %25 = sbr.rel (0) target = $region25
    $region24: #{tpu_custom_call.1} parent=1 // pred_region
      _
    $region25: #{tpu_custom_call.1} parent=1 // pred_fallthru
      _
    %v26 = vld [vmem:[%s2] sm:$0xff]
    %v27 = vld [vmem:[%s2 + $0x8] sm:$0xff]
    %v28 = vld [vmem:[%s2 + $0x10] sm:$0xff]
    %v29 = vld [vmem:[%s2 + $0x18] sm:$0xff]
    %v30 = vld [vmem:[%s0] sm:$0xff]
    %v31 = vld [vmem:[%s1] sm:$0x1]
    %v32 = vld [vmem:[%s3] sm:$0x1]
    %v34 = vlaneseq
    %v35 = vshrl.u32 %v34, 7
    %v36 = vsub.s32 0, %v35
    %v37 = vrot.slane %v32, %v36
    %vm39 = vcmask 7168
    %v41 = vsel %vm39, %v30, 0
    %vm43 = vcmask 1040384
    %v45 = vsel %vm43, %v31, 0
    %47 = vmatprep.subr.mxu0 0.0
    %48 = vmatpush1.msra.mxu0 %v45
    %49 = vmatprep.subr.mxu0 0.0
    %50 = vmatpush1.msra.mxu0 0.0
    %51 = vmatprep.subr.mxu0 0.0
    %52 = vmatpush1.msra.mxu0 0.0
    %53 = vmatprep.subr.mxu0 0.0
    %54 = vmatpush1.msra.mxu0 0.0
    %55 = vmatprep.subr.mxu0 0.0
    %56 = vmatpush1.msra.mxu0 0.0
    %57 = vmatprep.subr.mxu0 0.0
    %58 = vmatpush1.msra.mxu0 0.0
    %59 = vmatprep.subr.mxu0 0.0
    %60 = vmatpush1.msra.mxu0 0.0
    %61 = vmatprep.subr.mxu0 0.0
    %62 = vmatpush1.msra.mxu0 0.0
    %63 = vmatprep.subr.mxu0 0.0
    %64 = vmatpush1.msra.mxu0 0.0
    %65 = vmatprep.subr.mxu0 0.0
    %66 = vmatpush1.msra.mxu0 0.0
    %67 = vmatprep.subr.mxu0 0.0
    %68 = vmatpush1.msra.mxu0 0.0
    %69 = vmatprep.subr.mxu0 0.0
    %70 = vmatpush1.msra.mxu0 0.0
    %71 = vmatprep.subr.mxu0 0.0
    %72 = vmatpush1.msra.mxu0 0.0
    %73 = vmatprep.subr.mxu0 0.0
    %74 = vmatpush1.msra.mxu0 0.0
    %75 = vmatprep.subr.mxu0 0.0
    %76 = vmatpush1.msra.mxu0 0.0
    %77 = vmatprep.subr.mxu0 0.0
    %78 = vmatpush1.msra.mxu0 0.0
    %79 = vmatprep.subr.mxu0 0.0
    %80 = vmatpush1.msra.mxu0 0.0
    %81 = vmatprep.subr.mxu0 0.0
    %82 = vmatpush1.msra.mxu0 0.0
    %83 = vmatprep.subr.mxu0 0.0
    %84 = vmatpush1.msra.mxu0 0.0
    %85 = vmatprep.subr.mxu0 0.0
    %86 = vmatpush1.msra.mxu0 0.0
    %87 = vmatprep.subr.mxu0 0.0
    %88 = vmatpush1.msra.mxu0 0.0
    %89 = vmatprep.subr.mxu0 0.0
    %90 = vmatpush1.msra.mxu0 0.0
    %91 = vmatprep.subr.mxu0 0.0
    %92 = vmatpush1.msra.mxu0 0.0
    %93 = vmatprep.subr.mxu0 0.0
    %94 = vmatpush1.msra.mxu0 0.0
    %95 = vmatprep.subr.mxu0 0.0
    %96 = vmatpush1.msra.mxu0 0.0
    %97 = vmatprep.subr.mxu0 0.0
    %98 = vmatpush1.msra.mxu0 0.0
    %99 = vmatprep.subr.mxu0 0.0
    %100 = vmatpush1.msra.mxu0 0.0
    %101 = vmatprep.subr.mxu0 0.0
    %102 = vmatpush1.msra.mxu0 0.0
    %103 = vmatprep.subr.mxu0 0.0
    %104 = vmatpush1.msra.mxu0 0.0
    %105 = vmatprep.subr.mxu0 0.0
    %106 = vmatpush1.msra.mxu0 0.0
    %107 = vmatprep.subr.mxu0 0.0
    %108 = vmatpush1.msra.mxu0 0.0
    %109 = vmatprep.subr.mxu0 0.0
    %110 = vmatpush1.msra.mxu0 0.0
    %111 = vmatprep.mubr.f32.mxu0 0.0
    %112 = vmatmul.mubr.f32.gmra.mrb[0].mxu0 %v41
    %v113 = vpop.f32.mrb[0].mxu0
    %v114 = vadd.f32 %v37, %v113
    %v115 = vpop.f32.mrb[0].mxu0
    %116 = vdwg.mxu0
    %vm117 = vcmask 261120
    %v119 = vsel %vm117, 0.0, 0
    %121 = vmatprep.subr.mxu0 0.0
    %122 = vmatpush1.msra.mxu0 %v26
    %123 = vmatprep.subr.mxu0 0.0
    %124 = vmatpush1.msra.mxu0 %v27
    %125 = vmatprep.subr.mxu0 0.0
    %126 = vmatpush1.msra.mxu0 %v28
    %127 = vmatprep.subr.mxu0 0.0
    %128 = vmatpush1.msra.mxu0 %v29
    %129 = vmatprep.subr.mxu0 0.0
    %130 = vmatpush1.msra.mxu0 0.0
    %131 = vmatprep.subr.mxu0 0.0
    %132 = vmatpush1.msra.mxu0 0.0
    %133 = vmatprep.subr.mxu0 0.0
    %134 = vmatpush1.msra.mxu0 0.0
    %135 = vmatprep.subr.mxu0 0.0
    %136 = vmatpush1.msra.mxu0 0.0
    %137 = vmatprep.subr.mxu0 0.0
    %138 = vmatpush1.msra.mxu0 0.0
    %139 = vmatprep.subr.mxu0 0.0
    %140 = vmatpush1.msra.mxu0 0.0
    %141 = vmatprep.subr.mxu0 0.0
    %142 = vmatpush1.msra.mxu0 0.0
    %143 = vmatprep.subr.mxu0 0.0
    %144 = vmatpush1.msra.mxu0 0.0
    %145 = vmatprep.subr.mxu0 0.0
    %146 = vmatpush1.msra.mxu0 0.0
    %147 = vmatprep.subr.mxu0 0.0
    %148 = vmatpush1.msra.mxu0 0.0
    %149 = vmatprep.subr.mxu0 0.0
    %150 = vmatpush1.msra.mxu0 0.0
    %151 = vmatprep.subr.mxu0 0.0
    %152 = vmatpush1.msra.mxu0 0.0
    %153 = vmatprep.subr.mxu0 0.0
    %154 = vmatpush1.msra.mxu0 0.0
    %155 = vmatprep.subr.mxu0 0.0
    %156 = vmatpush1.msra.mxu0 0.0
    %157 = vmatprep.subr.mxu0 0.0
    %158 = vmatpush1.msra.mxu0 0.0
    %159 = vmatprep.subr.mxu0 0.0
    %160 = vmatpush1.msra.mxu0 0.0
    %161 = vmatprep.subr.mxu0 0.0
    %162 = vmatpush1.msra.mxu0 0.0
    %163 = vmatprep.subr.mxu0 0.0
    %164 = vmatpush1.msra.mxu0 0.0
    %165 = vmatprep.subr.mxu0 0.0
    %166 = vmatpush1.msra.mxu0 0.0
    %167 = vmatprep.subr.mxu0 0.0
    %168 = vmatpush1.msra.mxu0 0.0
    %169 = vmatprep.subr.mxu0 0.0
    %170 = vmatpush1.msra.mxu0 0.0
    %171 = vmatprep.subr.mxu0 0.0
    %172 = vmatpush1.msra.mxu0 0.0
    %173 = vmatprep.subr.mxu0 0.0
    %174 = vmatpush1.msra.mxu0 0.0
    %175 = vmatprep.subr.mxu0 0.0
    %176 = vmatpush1.msra.mxu0 0.0
    %177 = vmatprep.subr.mxu0 0.0
    %178 = vmatpush1.msra.mxu0 0.0
    %179 = vmatprep.subr.mxu0 0.0
    %180 = vmatpush1.msra.mxu0 0.0
    %181 = vmatprep.subr.mxu0 0.0
    %182 = vmatpush1.msra.mxu0 0.0
    %183 = vmatprep.subr.mxu0 0.0
    %184 = vmatpush1.msra.mxu0 0.0
    %185 = vmatprep.mubr.f32.mxu0 0.0
    %186 = vmatmul.mubr.f32.gmra.mrb[0].mxu0 %v119
    %v187 = vpop.f32.mrb[0].mxu0
    %v188 = vadd.f32 0.0, %v187
    %v189 = vpop.f32.mrb[0].mxu0
    %190 = vdwg.mxu0
    %v191 = vadd.f32 %v114, %v188
    %v192 = vxor.u32 %v191, 2147483648
    %v193 = vmul.f32 %v192, 1.442695
    %v194 = vpow.pop %v193
    %v195 = vadd.f32 %v194, 1.0
    %v196 = vrcp.pop %v195
    %v197 = vmul.f32 1.0, %v196
    %v198 = vtanh.pop %v191
    %v199 = vmul.f32 %v197, 0.0
    %201 = vrot.lane.b32.xlu0 %v198, 64
    %v202 = vpop.permute.xlu0 %201
    %v204 = vmul.f32 %v197, %v202
    %206 = vrot.lane.b32.xlu0 %v204, 32
    %v207 = vpop.permute.xlu0 %206
    %v209 = vadd.f32 %v199, %v207
    %v210 = vtanh.pop %v209
    %212 = vrot.lane.b32.xlu0 %v210, 64
    %v213 = vpop.permute.xlu0 %212
    %v215 = vmul.f32 %v197, %v213
    %217 = vrot.lane.b32.xlu0 %v215, 32
    %v218 = vpop.permute.xlu0 %217
    %v219 = vsel %vm117, %v218, 0
    %221 = vmatprep.subr.mxu0 0.0
    %222 = vmatpush1.msra.mxu0 %v26
    %223 = vmatprep.subr.mxu0 0.0
    %224 = vmatpush1.msra.mxu0 %v27
    %225 = vmatprep.subr.mxu0 0.0
    %226 = vmatpush1.msra.mxu0 %v28
    %227 = vmatprep.subr.mxu0 0.0
    %228 = vmatpush1.msra.mxu0 %v29
    %229 = vmatprep.subr.mxu0 0.0
    %230 = vmatpush1.msra.mxu0 0.0
    %231 = vmatprep.subr.mxu0 0.0
    %232 = vmatpush1.msra.mxu0 0.0
    %233 = vmatprep.subr.mxu0 0.0
    %234 = vmatpush1.msra.mxu0 0.0
    %235 = vmatprep.subr.mxu0 0.0
    %236 = vmatpush1.msra.mxu0 0.0
    %237 = vmatprep.subr.mxu0 0.0
    %238 = vmatpush1.msra.mxu0 0.0
    %239 = vmatprep.subr.mxu0 0.0
    %240 = vmatpush1.msra.mxu0 0.0
    %241 = vmatprep.subr.mxu0 0.0
    %242 = vmatpush1.msra.mxu0 0.0
    %243 = vmatprep.subr.mxu0 0.0
    %244 = vmatpush1.msra.mxu0 0.0
    %245 = vmatprep.subr.mxu0 0.0
    %246 = vmatpush1.msra.mxu0 0.0
    %247 = vmatprep.subr.mxu0 0.0
    %248 = vmatpush1.msra.mxu0 0.0
    %249 = vmatprep.subr.mxu0 0.0
    %250 = vmatpush1.msra.mxu0 0.0
    %251 = vmatprep.subr.mxu0 0.0
    %252 = vmatpush1.msra.mxu0 0.0
    %253 = vmatprep.subr.mxu0 0.0
    %254 = vmatpush1.msra.mxu0 0.0
    %255 = vmatprep.subr.mxu0 0.0
    %256 = vmatpush1.msra.mxu0 0.0
    %257 = vmatprep.subr.mxu0 0.0
    %258 = vmatpush1.msra.mxu0 0.0
    %259 = vmatprep.subr.mxu0 0.0
    %260 = vmatpush1.msra.mxu0 0.0
    %261 = vmatprep.subr.mxu0 0.0
    %262 = vmatpush1.msra.mxu0 0.0
    %263 = vmatprep.subr.mxu0 0.0
    %264 = vmatpush1.msra.mxu0 0.0
    %265 = vmatprep.subr.mxu0 0.0
    %266 = vmatpush1.msra.mxu0 0.0
    %267 = vmatprep.subr.mxu0 0.0
    %268 = vmatpush1.msra.mxu0 0.0
    %269 = vmatprep.subr.mxu0 0.0
    %270 = vmatpush1.msra.mxu0 0.0
    %271 = vmatprep.subr.mxu0 0.0
    %272 = vmatpush1.msra.mxu0 0.0
    %273 = vmatprep.subr.mxu0 0.0
    %274 = vmatpush1.msra.mxu0 0.0
    %275 = vmatprep.subr.mxu0 0.0
    %276 = vmatpush1.msra.mxu0 0.0
    %277 = vmatprep.subr.mxu0 0.0
    %278 = vmatpush1.msra.mxu0 0.0
    %279 = vmatprep.subr.mxu0 0.0
    %280 = vmatpush1.msra.mxu0 0.0
    %281 = vmatprep.subr.mxu0 0.0
    %282 = vmatpush1.msra.mxu0 0.0
    %283 = vmatprep.subr.mxu0 0.0
    %284 = vmatpush1.msra.mxu0 0.0
    %285 = vmatprep.mubr.f32.mxu0 0.0
    %286 = vmatmul.mubr.f32.gmra.mrb[0].mxu0 %v219
    %v287 = vpop.f32.mrb[0].mxu0
    %v288 = vadd.f32 0.0, %v287
    %v289 = vpop.f32.mrb[0].mxu0
    %290 = vdwg.mxu0
    %v292 = vrot.slane %v288, 7
    %v294 = vadd.f32 %v114, %v292
    %v295 = vxor.u32 %v294, 2147483648
    %v296 = vmul.f32 %v295, 1.442695
    %v297 = vpow.pop %v296
    %v298 = vadd.f32 %v297, 1.0
    %v299 = vrcp.pop %v298
    %v300 = vmul.f32 1.0, %v299
    %v301 = vtanh.pop %v294
    %v303 = vrot.slane %v209, 7
    %v305 = vmul.f32 %v300, %v303
    %307 = vrot.lane.b32.xlu0 %v301, 64
    %v308 = vpop.permute.xlu0 %307
    %v310 = vmul.f32 %v300, %v308
    %312 = vrot.lane.b32.xlu0 %v310, 32
    %v313 = vpop.permute.xlu0 %312
    %v315 = vadd.f32 %v305, %v313
    %v316 = vtanh.pop %v315
    %318 = vrot.lane.b32.xlu0 %v316, 64
    %v319 = vpop.permute.xlu0 %318
    %v321 = vmul.f32 %v300, %v319
    %v323 = vrot.slane %v321, 1
    %324 = vrot.lane.b32.xlu0 %v323, 32
    %v325 = vpop.permute.xlu0 %324
    %v326 = vsel %vm117, %v325, 0
    %328 = vmatprep.subr.mxu0 0.0
    %329 = vmatpush1.msra.mxu0 %v26
    %330 = vmatprep.subr.mxu0 0.0
    %331 = vmatpush1.msra.mxu0 %v27
    %332 = vmatprep.subr.mxu0 0.0
    %333 = vmatpush1.msra.mxu0 %v28
    %334 = vmatprep.subr.mxu0 0.0
    %335 = vmatpush1.msra.mxu0 %v29
    %336 = vmatprep.subr.mxu0 0.0
    %337 = vmatpush1.msra.mxu0 0.0
    %338 = vmatprep.subr.mxu0 0.0
    %339 = vmatpush1.msra.mxu0 0.0
    %340 = vmatprep.subr.mxu0 0.0
    %341 = vmatpush1.msra.mxu0 0.0
    %342 = vmatprep.subr.mxu0 0.0
    %343 = vmatpush1.msra.mxu0 0.0
    %344 = vmatprep.subr.mxu0 0.0
    %345 = vmatpush1.msra.mxu0 0.0
    %346 = vmatprep.subr.mxu0 0.0
    %347 = vmatpush1.msra.mxu0 0.0
    %348 = vmatprep.subr.mxu0 0.0
    %349 = vmatpush1.msra.mxu0 0.0
    %350 = vmatprep.subr.mxu0 0.0
    %351 = vmatpush1.msra.mxu0 0.0
    %352 = vmatprep.subr.mxu0 0.0
    %353 = vmatpush1.msra.mxu0 0.0
    %354 = vmatprep.subr.mxu0 0.0
    %355 = vmatpush1.msra.mxu0 0.0
    %356 = vmatprep.subr.mxu0 0.0
    %357 = vmatpush1.msra.mxu0 0.0
    %358 = vmatprep.subr.mxu0 0.0
    %359 = vmatpush1.msra.mxu0 0.0
    %360 = vmatprep.subr.mxu0 0.0
    %361 = vmatpush1.msra.mxu0 0.0
    %362 = vmatprep.subr.mxu0 0.0
    %363 = vmatpush1.msra.mxu0 0.0
    %364 = vmatprep.subr.mxu0 0.0
    %365 = vmatpush1.msra.mxu0 0.0
    %366 = vmatprep.subr.mxu0 0.0
    %367 = vmatpush1.msra.mxu0 0.0
    %368 = vmatprep.subr.mxu0 0.0
    %369 = vmatpush1.msra.mxu0 0.0
    %370 = vmatprep.subr.mxu0 0.0
    %371 = vmatpush1.msra.mxu0 0.0
    %372 = vmatprep.subr.mxu0 0.0
    %373 = vmatpush1.msra.mxu0 0.0
    %374 = vmatprep.subr.mxu0 0.0
    %375 = vmatpush1.msra.mxu0 0.0
    %376 = vmatprep.subr.mxu0 0.0
    %377 = vmatpush1.msra.mxu0 0.0
    %378 = vmatprep.subr.mxu0 0.0
    %379 = vmatpush1.msra.mxu0 0.0
    %380 = vmatprep.subr.mxu0 0.0
    %381 = vmatpush1.msra.mxu0 0.0
    %382 = vmatprep.subr.mxu0 0.0
    %383 = vmatpush1.msra.mxu0 0.0
    %384 = vmatprep.subr.mxu0 0.0
    %385 = vmatpush1.msra.mxu0 0.0
    %386 = vmatprep.subr.mxu0 0.0
    %387 = vmatpush1.msra.mxu0 0.0
    %388 = vmatprep.subr.mxu0 0.0
    %389 = vmatpush1.msra.mxu0 0.0
    %390 = vmatprep.subr.mxu0 0.0
    %391 = vmatpush1.msra.mxu0 0.0
    %392 = vmatprep.mubr.f32.mxu0 0.0
    %393 = vmatmul.mubr.f32.gmra.mrb[0].mxu0 %v326
    %v394 = vpop.f32.mrb[0].mxu0
    %v395 = vadd.f32 0.0, %v394
    %v396 = vpop.f32.mrb[0].mxu0
    %397 = vdwg.mxu0
    %v399 = vrot.slane %v395, 6
    %v401 = vadd.f32 %v114, %v399
    %v402 = vxor.u32 %v401, 2147483648
    %v403 = vmul.f32 %v402, 1.442695
    %v404 = vpow.pop %v403
    %v405 = vadd.f32 %v404, 1.0
    %v406 = vrcp.pop %v405
    %v407 = vmul.f32 1.0, %v406
    %v408 = vtanh.pop %v401
    %v410 = vrot.slane %v315, 7
    %v412 = vmul.f32 %v407, %v410
    %414 = vrot.lane.b32.xlu0 %v408, 64
    %v415 = vpop.permute.xlu0 %414
    %v417 = vmul.f32 %v407, %v415
    %419 = vrot.lane.b32.xlu0 %v417, 32
    %v420 = vpop.permute.xlu0 %419
    %v422 = vadd.f32 %v412, %v420
    %v423 = vtanh.pop %v422
    %425 = vrot.lane.b32.xlu0 %v423, 64
    %v426 = vpop.permute.xlu0 %425
    %v428 = vmul.f32 %v407, %v426
    %v430 = vrot.slane %v428, 2
    %431 = vrot.lane.b32.xlu0 %v430, 32
    %v432 = vpop.permute.xlu0 %431
    %v433 = vsel %vm117, %v432, 0
    %435 = vmatprep.subr.mxu0 0.0
    %436 = vmatpush1.msra.mxu0 %v26
    %437 = vmatprep.subr.mxu0 0.0
    %438 = vmatpush1.msra.mxu0 %v27
    %439 = vmatprep.subr.mxu0 0.0
    %440 = vmatpush1.msra.mxu0 %v28
    %441 = vmatprep.subr.mxu0 0.0
    %442 = vmatpush1.msra.mxu0 %v29
    %443 = vmatprep.subr.mxu0 0.0
    %444 = vmatpush1.msra.mxu0 0.0
    %445 = vmatprep.subr.mxu0 0.0
    %446 = vmatpush1.msra.mxu0 0.0
    %447 = vmatprep.subr.mxu0 0.0
    %448 = vmatpush1.msra.mxu0 0.0
    %449 = vmatprep.subr.mxu0 0.0
    %450 = vmatpush1.msra.mxu0 0.0
    %451 = vmatprep.subr.mxu0 0.0
    %452 = vmatpush1.msra.mxu0 0.0
    %453 = vmatprep.subr.mxu0 0.0
    %454 = vmatpush1.msra.mxu0 0.0
    %455 = vmatprep.subr.mxu0 0.0
    %456 = vmatpush1.msra.mxu0 0.0
    %457 = vmatprep.subr.mxu0 0.0
    %458 = vmatpush1.msra.mxu0 0.0
    %459 = vmatprep.subr.mxu0 0.0
    %460 = vmatpush1.msra.mxu0 0.0
    %461 = vmatprep.subr.mxu0 0.0
    %462 = vmatpush1.msra.mxu0 0.0
    %463 = vmatprep.subr.mxu0 0.0
    %464 = vmatpush1.msra.mxu0 0.0
    %465 = vmatprep.subr.mxu0 0.0
    %466 = vmatpush1.msra.mxu0 0.0
    %467 = vmatprep.subr.mxu0 0.0
    %468 = vmatpush1.msra.mxu0 0.0
    %469 = vmatprep.subr.mxu0 0.0
    %470 = vmatpush1.msra.mxu0 0.0
    %471 = vmatprep.subr.mxu0 0.0
    %472 = vmatpush1.msra.mxu0 0.0
    %473 = vmatprep.subr.mxu0 0.0
    %474 = vmatpush1.msra.mxu0 0.0
    %475 = vmatprep.subr.mxu0 0.0
    %476 = vmatpush1.msra.mxu0 0.0
    %477 = vmatprep.subr.mxu0 0.0
    %478 = vmatpush1.msra.mxu0 0.0
    %479 = vmatprep.subr.mxu0 0.0
    %480 = vmatpush1.msra.mxu0 0.0
    %481 = vmatprep.subr.mxu0 0.0
    %482 = vmatpush1.msra.mxu0 0.0
    %483 = vmatprep.subr.mxu0 0.0
    %484 = vmatpush1.msra.mxu0 0.0
    %485 = vmatprep.subr.mxu0 0.0
    %486 = vmatpush1.msra.mxu0 0.0
    %487 = vmatprep.subr.mxu0 0.0
    %488 = vmatpush1.msra.mxu0 0.0
    %489 = vmatprep.subr.mxu0 0.0
    %490 = vmatpush1.msra.mxu0 0.0
    %491 = vmatprep.subr.mxu0 0.0
    %492 = vmatpush1.msra.mxu0 0.0
    %493 = vmatprep.subr.mxu0 0.0
    %494 = vmatpush1.msra.mxu0 0.0
    %495 = vmatprep.subr.mxu0 0.0
    %496 = vmatpush1.msra.mxu0 0.0
    %497 = vmatprep.subr.mxu0 0.0
    %498 = vmatpush1.msra.mxu0 0.0
    %499 = vmatprep.mubr.f32.mxu0 0.0
    %500 = vmatmul.mubr.f32.gmra.mrb[0].mxu0 %v433
    %v501 = vpop.f32.mrb[0].mxu0
    %v502 = vadd.f32 0.0, %v501
    %v503 = vpop.f32.mrb[0].mxu0
    %504 = vdwg.mxu0
    %v506 = vrot.slane %v502, 5
    %v508 = vadd.f32 %v114, %v506
    %v509 = vxor.u32 %v508, 2147483648
    %v510 = vmul.f32 %v509, 1.442695
    %v511 = vpow.pop %v510
    %v512 = vadd.f32 %v511, 1.0
    %v513 = vrcp.pop %v512
    %v514 = vmul.f32 1.0, %v513
    %v515 = vtanh.pop %v508
    %v517 = vrot.slane %v422, 7
    %v519 = vmul.f32 %v514, %v517
    %521 = vrot.lane.b32.xlu0 %v515, 64
    %v522 = vpop.permute.xlu0 %521
    %v524 = vmul.f32 %v514, %v522
    %526 = vrot.lane.b32.xlu0 %v524, 32
    %v527 = vpop.permute.xlu0 %526
    %v529 = vadd.f32 %v519, %v527
    %v530 = vtanh.pop %v529
    %532 = vrot.lane.b32.xlu0 %v530, 64
    %v533 = vpop.permute.xlu0 %532
    %v535 = vmul.f32 %v514, %v533
    %v537 = vrot.slane %v535, 3
    %538 = vrot.lane.b32.xlu0 %v537, 32
    %v539 = vpop.permute.xlu0 %538
    %v540 = vsel %vm117, %v539, 0
    %542 = vmatprep.subr.mxu0 0.0
    %543 = vmatpush1.msra.mxu0 %v26
    %544 = vmatprep.subr.mxu0 0.0
    %545 = vmatpush1.msra.mxu0 %v27
    %546 = vmatprep.subr.mxu0 0.0
    %547 = vmatpush1.msra.mxu0 %v28
    %548 = vmatprep.subr.mxu0 0.0
    %549 = vmatpush1.msra.mxu0 %v29
    %550 = vmatprep.subr.mxu0 0.0
    %551 = vmatpush1.msra.mxu0 0.0
    %552 = vmatprep.subr.mxu0 0.0
    %553 = vmatpush1.msra.mxu0 0.0
    %554 = vmatprep.subr.mxu0 0.0
    %555 = vmatpush1.msra.mxu0 0.0
    %556 = vmatprep.subr.mxu0 0.0
    %557 = vmatpush1.msra.mxu0 0.0
    %558 = vmatprep.subr.mxu0 0.0
    %559 = vmatpush1.msra.mxu0 0.0
    %560 = vmatprep.subr.mxu0 0.0
    %561 = vmatpush1.msra.mxu0 0.0
    %562 = vmatprep.subr.mxu0 0.0
    %563 = vmatpush1.msra.mxu0 0.0
    %564 = vmatprep.subr.mxu0 0.0
    %565 = vmatpush1.msra.mxu0 0.0
    %566 = vmatprep.subr.mxu0 0.0
    %567 = vmatpush1.msra.mxu0 0.0
    %568 = vmatprep.subr.mxu0 0.0
    %569 = vmatpush1.msra.mxu0 0.0
    %570 = vmatprep.subr.mxu0 0.0
    %571 = vmatpush1.msra.mxu0 0.0
    %572 = vmatprep.subr.mxu0 0.0
    %573 = vmatpush1.msra.mxu0 0.0
    %574 = vmatprep.subr.mxu0 0.0
    %575 = vmatpush1.msra.mxu0 0.0
    %576 = vmatprep.subr.mxu0 0.0
    %577 = vmatpush1.msra.mxu0 0.0
    %578 = vmatprep.subr.mxu0 0.0
    %579 = vmatpush1.msra.mxu0 0.0
    %580 = vmatprep.subr.mxu0 0.0
    %581 = vmatpush1.msra.mxu0 0.0
    %582 = vmatprep.subr.mxu0 0.0
    %583 = vmatpush1.msra.mxu0 0.0
    %584 = vmatprep.subr.mxu0 0.0
    %585 = vmatpush1.msra.mxu0 0.0
    %586 = vmatprep.subr.mxu0 0.0
    %587 = vmatpush1.msra.mxu0 0.0
    %588 = vmatprep.subr.mxu0 0.0
    %589 = vmatpush1.msra.mxu0 0.0
    %590 = vmatprep.subr.mxu0 0.0
    %591 = vmatpush1.msra.mxu0 0.0
    %592 = vmatprep.subr.mxu0 0.0
    %593 = vmatpush1.msra.mxu0 0.0
    %594 = vmatprep.subr.mxu0 0.0
    %595 = vmatpush1.msra.mxu0 0.0
    %596 = vmatprep.subr.mxu0 0.0
    %597 = vmatpush1.msra.mxu0 0.0
    %598 = vmatprep.subr.mxu0 0.0
    %599 = vmatpush1.msra.mxu0 0.0
    %600 = vmatprep.subr.mxu0 0.0
    %601 = vmatpush1.msra.mxu0 0.0
    %602 = vmatprep.subr.mxu0 0.0
    %603 = vmatpush1.msra.mxu0 0.0
    %604 = vmatprep.subr.mxu0 0.0
    %605 = vmatpush1.msra.mxu0 0.0
    %606 = vmatprep.mubr.f32.mxu0 0.0
    %607 = vmatmul.mubr.f32.gmra.mrb[0].mxu0 %v540
    %v608 = vpop.f32.mrb[0].mxu0
    %v609 = vadd.f32 0.0, %v608
    %v610 = vpop.f32.mrb[0].mxu0
    %611 = vdwg.mxu0
    %v613 = vrot.slane %v609, 4
    %v615 = vadd.f32 %v114, %v613
    %v616 = vxor.u32 %v615, 2147483648
    %v617 = vmul.f32 %v616, 1.442695
    %v618 = vpow.pop %v617
    %v619 = vadd.f32 %v618, 1.0
    %v620 = vrcp.pop %v619
    %v621 = vmul.f32 1.0, %v620
    %v622 = vtanh.pop %v615
    %v624 = vrot.slane %v529, 7
    %v626 = vmul.f32 %v621, %v624
    %628 = vrot.lane.b32.xlu0 %v622, 64
    %v629 = vpop.permute.xlu0 %628
    %v631 = vmul.f32 %v621, %v629
    %633 = vrot.lane.b32.xlu0 %v631, 32
    %v634 = vpop.permute.xlu0 %633
    %v636 = vadd.f32 %v626, %v634
    %v637 = vtanh.pop %v636
    %639 = vrot.lane.b32.xlu0 %v637, 64
    %v640 = vpop.permute.xlu0 %639
    %v642 = vmul.f32 %v621, %v640
    %v644 = vrot.slane %v642, 4
    %645 = vrot.lane.b32.xlu0 %v644, 32
    %v646 = vpop.permute.xlu0 %645
    %v647 = vsel %vm117, %v646, 0
    %649 = vmatprep.subr.mxu0 0.0
    %650 = vmatpush1.msra.mxu0 %v26
    %651 = vmatprep.subr.mxu0 0.0
    %652 = vmatpush1.msra.mxu0 %v27
    %653 = vmatprep.subr.mxu0 0.0
    %654 = vmatpush1.msra.mxu0 %v28
    %655 = vmatprep.subr.mxu0 0.0
    %656 = vmatpush1.msra.mxu0 %v29
    %657 = vmatprep.subr.mxu0 0.0
    %658 = vmatpush1.msra.mxu0 0.0
    %659 = vmatprep.subr.mxu0 0.0
    %660 = vmatpush1.msra.mxu0 0.0
    %661 = vmatprep.subr.mxu0 0.0
    %662 = vmatpush1.msra.mxu0 0.0
    %663 = vmatprep.subr.mxu0 0.0
    %664 = vmatpush1.msra.mxu0 0.0
    %665 = vmatprep.subr.mxu0 0.0
    %666 = vmatpush1.msra.mxu0 0.0
    %667 = vmatprep.subr.mxu0 0.0
    %668 = vmatpush1.msra.mxu0 0.0
    %669 = vmatprep.subr.mxu0 0.0
    %670 = vmatpush1.msra.mxu0 0.0
    %671 = vmatprep.subr.mxu0 0.0
    %672 = vmatpush1.msra.mxu0 0.0
    %673 = vmatprep.subr.mxu0 0.0
    %674 = vmatpush1.msra.mxu0 0.0
    %675 = vmatprep.subr.mxu0 0.0
    %676 = vmatpush1.msra.mxu0 0.0
    %677 = vmatprep.subr.mxu0 0.0
    %678 = vmatpush1.msra.mxu0 0.0
    %679 = vmatprep.subr.mxu0 0.0
    %680 = vmatpush1.msra.mxu0 0.0
    %681 = vmatprep.subr.mxu0 0.0
    %682 = vmatpush1.msra.mxu0 0.0
    %683 = vmatprep.subr.mxu0 0.0
    %684 = vmatpush1.msra.mxu0 0.0
    %685 = vmatprep.subr.mxu0 0.0
    %686 = vmatpush1.msra.mxu0 0.0
    %687 = vmatprep.subr.mxu0 0.0
    %688 = vmatpush1.msra.mxu0 0.0
    %689 = vmatprep.subr.mxu0 0.0
    %690 = vmatpush1.msra.mxu0 0.0
    %691 = vmatprep.subr.mxu0 0.0
    %692 = vmatpush1.msra.mxu0 0.0
    %693 = vmatprep.subr.mxu0 0.0
    %694 = vmatpush1.msra.mxu0 0.0
    %695 = vmatprep.subr.mxu0 0.0
    %696 = vmatpush1.msra.mxu0 0.0
    %697 = vmatprep.subr.mxu0 0.0
    %698 = vmatpush1.msra.mxu0 0.0
    %699 = vmatprep.subr.mxu0 0.0
    %700 = vmatpush1.msra.mxu0 0.0
    %701 = vmatprep.subr.mxu0 0.0
    %702 = vmatpush1.msra.mxu0 0.0
    %703 = vmatprep.subr.mxu0 0.0
    %704 = vmatpush1.msra.mxu0 0.0
    %705 = vmatprep.subr.mxu0 0.0
    %706 = vmatpush1.msra.mxu0 0.0
    %707 = vmatprep.subr.mxu0 0.0
    %708 = vmatpush1.msra.mxu0 0.0
    %709 = vmatprep.subr.mxu0 0.0
    %710 = vmatpush1.msra.mxu0 0.0
    %711 = vmatprep.subr.mxu0 0.0
    %712 = vmatpush1.msra.mxu0 0.0
    %713 = vmatprep.mubr.f32.mxu0 0.0
    %714 = vmatmul.mubr.f32.gmra.mrb[0].mxu0 %v647
    %v715 = vpop.f32.mrb[0].mxu0
    %v716 = vadd.f32 0.0, %v715
    %v717 = vpop.f32.mrb[0].mxu0
    %718 = vdwg.mxu0
    %v720 = vrot.slane %v716, 3
    %v722 = vadd.f32 %v114, %v720
    %v723 = vxor.u32 %v722, 2147483648
    %v724 = vmul.f32 %v723, 1.442695
    %v725 = vpow.pop %v724
    %v726 = vadd.f32 %v725, 1.0
    %v727 = vrcp.pop %v726
    %v728 = vmul.f32 1.0, %v727
    %v729 = vtanh.pop %v722
    %v731 = vrot.slane %v636, 7
    %v733 = vmul.f32 %v728, %v731
    %735 = vrot.lane.b32.xlu0 %v729, 64
    %v736 = vpop.permute.xlu0 %735
    %v738 = vmul.f32 %v728, %v736
    %740 = vrot.lane.b32.xlu0 %v738, 32
    %v741 = vpop.permute.xlu0 %740
    %v743 = vadd.f32 %v733, %v741
    %v744 = vtanh.pop %v743
    %746 = vrot.lane.b32.xlu0 %v744, 64
    %v747 = vpop.permute.xlu0 %746
    %v749 = vmul.f32 %v728, %v747
    %v751 = vrot.slane %v749, 5
    %752 = vrot.lane.b32.xlu0 %v751, 32
    %v753 = vpop.permute.xlu0 %752
    %v754 = vsel %vm117, %v753, 0
    %756 = vmatprep.subr.mxu0 0.0
    %757 = vmatpush1.msra.mxu0 %v26
    %758 = vmatprep.subr.mxu0 0.0
    %759 = vmatpush1.msra.mxu0 %v27
    %760 = vmatprep.subr.mxu0 0.0
    %761 = vmatpush1.msra.mxu0 %v28
    %762 = vmatprep.subr.mxu0 0.0
    %763 = vmatpush1.msra.mxu0 %v29
    %764 = vmatprep.subr.mxu0 0.0
    %765 = vmatpush1.msra.mxu0 0.0
    %766 = vmatprep.subr.mxu0 0.0
    %767 = vmatpush1.msra.mxu0 0.0
    %768 = vmatprep.subr.mxu0 0.0
    %769 = vmatpush1.msra.mxu0 0.0
    %770 = vmatprep.subr.mxu0 0.0
    %771 = vmatpush1.msra.mxu0 0.0
    %772 = vmatprep.subr.mxu0 0.0
    %773 = vmatpush1.msra.mxu0 0.0
    %774 = vmatprep.subr.mxu0 0.0
    %775 = vmatpush1.msra.mxu0 0.0
    %776 = vmatprep.subr.mxu0 0.0
    %777 = vmatpush1.msra.mxu0 0.0
    %778 = vmatprep.subr.mxu0 0.0
    %779 = vmatpush1.msra.mxu0 0.0
    %780 = vmatprep.subr.mxu0 0.0
    %781 = vmatpush1.msra.mxu0 0.0
    %782 = vmatprep.subr.mxu0 0.0
    %783 = vmatpush1.msra.mxu0 0.0
    %784 = vmatprep.subr.mxu0 0.0
    %785 = vmatpush1.msra.mxu0 0.0
    %786 = vmatprep.subr.mxu0 0.0
    %787 = vmatpush1.msra.mxu0 0.0
    %788 = vmatprep.subr.mxu0 0.0
    %789 = vmatpush1.msra.mxu0 0.0
    %790 = vmatprep.subr.mxu0 0.0
    %791 = vmatpush1.msra.mxu0 0.0
    %792 = vmatprep.subr.mxu0 0.0
    %793 = vmatpush1.msra.mxu0 0.0
    %794 = vmatprep.subr.mxu0 0.0
    %795 = vmatpush1.msra.mxu0 0.0
    %796 = vmatprep.subr.mxu0 0.0
    %797 = vmatpush1.msra.mxu0 0.0
    %798 = vmatprep.subr.mxu0 0.0
    %799 = vmatpush1.msra.mxu0 0.0
    %800 = vmatprep.subr.mxu0 0.0
    %801 = vmatpush1.msra.mxu0 0.0
    %802 = vmatprep.subr.mxu0 0.0
    %803 = vmatpush1.msra.mxu0 0.0
    %804 = vmatprep.subr.mxu0 0.0
    %805 = vmatpush1.msra.mxu0 0.0
    %806 = vmatprep.subr.mxu0 0.0
    %807 = vmatpush1.msra.mxu0 0.0
    %808 = vmatprep.subr.mxu0 0.0
    %809 = vmatpush1.msra.mxu0 0.0
    %810 = vmatprep.subr.mxu0 0.0
    %811 = vmatpush1.msra.mxu0 0.0
    %812 = vmatprep.subr.mxu0 0.0
    %813 = vmatpush1.msra.mxu0 0.0
    %814 = vmatprep.subr.mxu0 0.0
    %815 = vmatpush1.msra.mxu0 0.0
    %816 = vmatprep.subr.mxu0 0.0
    %817 = vmatpush1.msra.mxu0 0.0
    %818 = vmatprep.subr.mxu0 0.0
    %819 = vmatpush1.msra.mxu0 0.0
    %820 = vmatprep.mubr.f32.mxu0 0.0
    %821 = vmatmul.mubr.f32.gmra.mrb[0].mxu0 %v754
    %v822 = vpop.f32.mrb[0].mxu0
    %v823 = vadd.f32 0.0, %v822
    %v824 = vpop.f32.mrb[0].mxu0
    %825 = vdwg.mxu0
    %v827 = vrot.slane %v823, 2
    %v829 = vadd.f32 %v114, %v827
    %v830 = vxor.u32 %v829, 2147483648
    %v831 = vmul.f32 %v830, 1.442695
    %v832 = vpow.pop %v831
    %v833 = vadd.f32 %v832, 1.0
    %v834 = vrcp.pop %v833
    %v835 = vmul.f32 1.0, %v834
    %v836 = vtanh.pop %v829
    %v838 = vrot.slane %v743, 7
    %v840 = vmul.f32 %v835, %v838
    %842 = vrot.lane.b32.xlu0 %v836, 64
    %v843 = vpop.permute.xlu0 %842
    %v845 = vmul.f32 %v835, %v843
    %847 = vrot.lane.b32.xlu0 %v845, 32
    %v848 = vpop.permute.xlu0 %847
    %v850 = vadd.f32 %v840, %v848
    %v851 = vtanh.pop %v850
    %853 = vrot.lane.b32.xlu0 %v851, 64
    %v854 = vpop.permute.xlu0 %853
    %v856 = vmul.f32 %v835, %v854
    %v858 = vrot.slane %v856, 6
    %859 = vrot.lane.b32.xlu0 %v858, 32
    %v860 = vpop.permute.xlu0 %859
    %v861 = vsel %vm117, %v860, 0
    %863 = vmatprep.subr.mxu0 0.0
    %864 = vmatpush1.msra.mxu0 %v26
    %865 = vmatprep.subr.mxu0 0.0
    %866 = vmatpush1.msra.mxu0 %v27
    %867 = vmatprep.subr.mxu0 0.0
    %868 = vmatpush1.msra.mxu0 %v28
    %869 = vmatprep.subr.mxu0 0.0
    %870 = vmatpush1.msra.mxu0 %v29
    %871 = vmatprep.subr.mxu0 0.0
    %872 = vmatpush1.msra.mxu0 0.0
    %873 = vmatprep.subr.mxu0 0.0
    %874 = vmatpush1.msra.mxu0 0.0
    %875 = vmatprep.subr.mxu0 0.0
    %876 = vmatpush1.msra.mxu0 0.0
    %877 = vmatprep.subr.mxu0 0.0
    %878 = vmatpush1.msra.mxu0 0.0
    %879 = vmatprep.subr.mxu0 0.0
    %880 = vmatpush1.msra.mxu0 0.0
    %881 = vmatprep.subr.mxu0 0.0
    %882 = vmatpush1.msra.mxu0 0.0
    %883 = vmatprep.subr.mxu0 0.0
    %884 = vmatpush1.msra.mxu0 0.0
    %885 = vmatprep.subr.mxu0 0.0
    %886 = vmatpush1.msra.mxu0 0.0
    %887 = vmatprep.subr.mxu0 0.0
    %888 = vmatpush1.msra.mxu0 0.0
    %889 = vmatprep.subr.mxu0 0.0
    %890 = vmatpush1.msra.mxu0 0.0
    %891 = vmatprep.subr.mxu0 0.0
    %892 = vmatpush1.msra.mxu0 0.0
    %893 = vmatprep.subr.mxu0 0.0
    %894 = vmatpush1.msra.mxu0 0.0
    %895 = vmatprep.subr.mxu0 0.0
    %896 = vmatpush1.msra.mxu0 0.0
    %897 = vmatprep.subr.mxu0 0.0
    %898 = vmatpush1.msra.mxu0 0.0
    %899 = vmatprep.subr.mxu0 0.0
    %900 = vmatpush1.msra.mxu0 0.0
    %901 = vmatprep.subr.mxu0 0.0
    %902 = vmatpush1.msra.mxu0 0.0
    %903 = vmatprep.subr.mxu0 0.0
    %904 = vmatpush1.msra.mxu0 0.0
    %905 = vmatprep.subr.mxu0 0.0
    %906 = vmatpush1.msra.mxu0 0.0
    %907 = vmatprep.subr.mxu0 0.0
    %908 = vmatpush1.msra.mxu0 0.0
    %909 = vmatprep.subr.mxu0 0.0
    %910 = vmatpush1.msra.mxu0 0.0
    %911 = vmatprep.subr.mxu0 0.0
    %912 = vmatpush1.msra.mxu0 0.0
    %913 = vmatprep.subr.mxu0 0.0
    %914 = vmatpush1.msra.mxu0 0.0
    %915 = vmatprep.subr.mxu0 0.0
    %916 = vmatpush1.msra.mxu0 0.0
    %917 = vmatprep.subr.mxu0 0.0
    %918 = vmatpush1.msra.mxu0 0.0
    %919 = vmatprep.subr.mxu0 0.0
    %920 = vmatpush1.msra.mxu0 0.0
    %921 = vmatprep.subr.mxu0 0.0
    %922 = vmatpush1.msra.mxu0 0.0
    %923 = vmatprep.subr.mxu0 0.0
    %924 = vmatpush1.msra.mxu0 0.0
    %925 = vmatprep.subr.mxu0 0.0
    %926 = vmatpush1.msra.mxu0 0.0
    %927 = vmatprep.mubr.f32.mxu0 0.0
    %928 = vmatmul.mubr.f32.gmra.mrb[0].mxu0 %v861
    %v929 = vpop.f32.mrb[0].mxu0
    %v930 = vadd.f32 0.0, %v929
    %v931 = vpop.f32.mrb[0].mxu0
    %932 = vdwg.mxu0
    %v934 = vrot.slane %v930, 1
    %v936 = vadd.f32 %v114, %v934
    %v937 = vxor.u32 %v936, 2147483648
    %v938 = vmul.f32 %v937, 1.442695
    %v939 = vpow.pop %v938
    %v940 = vadd.f32 %v939, 1.0
    %v941 = vrcp.pop %v940
    %v942 = vmul.f32 1.0, %v941
    %v943 = vtanh.pop %v936
    %v945 = vrot.slane %v850, 7
    %v947 = vmul.f32 %v942, %v945
    %949 = vrot.lane.b32.xlu0 %v943, 64
    %v950 = vpop.permute.xlu0 %949
    %v952 = vmul.f32 %v942, %v950
    %954 = vrot.lane.b32.xlu0 %v952, 32
    %v955 = vpop.permute.xlu0 %954
    %v957 = vadd.f32 %v947, %v955
    %v958 = vtanh.pop %v957
    %960 = vrot.lane.b32.xlu0 %v958, 64
    %v961 = vpop.permute.xlu0 %960
    %v963 = vmul.f32 %v942, %v961
    %v964 = vld [vmem:[%s4] sm:$0xff]
    %v965 = vld [vmem:[%s4 + $0x8] sm:$0xff]
    %v966 = vld [vmem:[%s4 + $0x10] sm:$0xff]
    %v967 = vld [vmem:[%s4 + $0x18] sm:$0xff]
    %v968 = vld [vmem:[#allocation2] sm:$0x1]
    %v970 = vrot.slane %v963, 7
    %971 = vrot.lane.b32.xlu0 %v970, 32
    %v972 = vpop.permute.xlu0 %971
    %v973 = vsel %vm117, %v972, 0
    %975 = vmatprep.subr.mxu0 0.0
    %976 = vmatpush1.msra.mxu0 %v964
    %977 = vmatprep.subr.mxu0 0.0
    %978 = vmatpush1.msra.mxu0 %v965
    %979 = vmatprep.subr.mxu0 0.0
    %980 = vmatpush1.msra.mxu0 %v966
    %981 = vmatprep.subr.mxu0 0.0
    %982 = vmatpush1.msra.mxu0 %v967
    %983 = vmatprep.subr.mxu0 0.0
    %984 = vmatpush1.msra.mxu0 0.0
    %985 = vmatprep.subr.mxu0 0.0
    %986 = vmatpush1.msra.mxu0 0.0
    %987 = vmatprep.subr.mxu0 0.0
    %988 = vmatpush1.msra.mxu0 0.0
    %989 = vmatprep.subr.mxu0 0.0
    %990 = vmatpush1.msra.mxu0 0.0
    %991 = vmatprep.subr.mxu0 0.0
    %992 = vmatpush1.msra.mxu0 0.0
    %993 = vmatprep.subr.mxu0 0.0
    %994 = vmatpush1.msra.mxu0 0.0
    %995 = vmatprep.subr.mxu0 0.0
    %996 = vmatpush1.msra.mxu0 0.0
    %997 = vmatprep.subr.mxu0 0.0
    %998 = vmatpush1.msra.mxu0 0.0
    %999 = vmatprep.subr.mxu0 0.0
    %1000 = vmatpush1.msra.mxu0 0.0
    %1001 = vmatprep.subr.mxu0 0.0
    %1002 = vmatpush1.msra.mxu0 0.0
    %1003 = vmatprep.subr.mxu0 0.0
    %1004 = vmatpush1.msra.mxu0 0.0
    %1005 = vmatprep.subr.mxu0 0.0
    %1006 = vmatpush1.msra.mxu0 0.0
    %1007 = vmatprep.subr.mxu0 0.0
    %1008 = vmatpush1.msra.mxu0 0.0
    %1009 = vmatprep.subr.mxu0 0.0
    %1010 = vmatpush1.msra.mxu0 0.0
    %1011 = vmatprep.subr.mxu0 0.0
    %1012 = vmatpush1.msra.mxu0 0.0
    %1013 = vmatprep.subr.mxu0 0.0
    %1014 = vmatpush1.msra.mxu0 0.0
    %1015 = vmatprep.subr.mxu0 0.0
    %1016 = vmatpush1.msra.mxu0 0.0
    %1017 = vmatprep.subr.mxu0 0.0
    %1018 = vmatpush1.msra.mxu0 0.0
    %1019 = vmatprep.subr.mxu0 0.0
    %1020 = vmatpush1.msra.mxu0 0.0
    %1021 = vmatprep.subr.mxu0 0.0
    %1022 = vmatpush1.msra.mxu0 0.0
    %1023 = vmatprep.subr.mxu0 0.0
    %1024 = vmatpush1.msra.mxu0 0.0
    %1025 = vmatprep.subr.mxu0 0.0
    %1026 = vmatpush1.msra.mxu0 0.0
    %1027 = vmatprep.subr.mxu0 0.0
    %1028 = vmatpush1.msra.mxu0 0.0
    %1029 = vmatprep.subr.mxu0 0.0
    %1030 = vmatpush1.msra.mxu0 0.0
    %1031 = vmatprep.subr.mxu0 0.0
    %1032 = vmatpush1.msra.mxu0 0.0
    %1033 = vmatprep.subr.mxu0 0.0
    %1034 = vmatpush1.msra.mxu0 0.0
    %1035 = vmatprep.subr.mxu0 0.0
    %1036 = vmatpush1.msra.mxu0 0.0
    %1037 = vmatprep.subr.mxu0 0.0
    %1038 = vmatpush1.msra.mxu0 0.0
    %1039 = vmatprep.mubr.f32.mxu0 0.0
    %1040 = vmatmul.mubr.f32.gmra.mrb[0].mxu0 %v973
    %v1041 = vpop.f32.mrb[0].mxu0
    %v1042 = vadd.f32 %v968, %v1041
    %v1043 = vpop.f32.mrb[0].mxu0
    %1044 = vdwg.mxu0
    %vm1045 = vcmask 0
    %1046 = vst.msk [vmem:[#allocation3] sm:$0x1] %vm1045, %v1042
    // Predicated region
    $region26: #{tpu_custom_call.1} parent=1 // pred_check
      _
    $region27: #{tpu_custom_call.1} parent=1 // pred_check_branch
      %1048 = sbr.rel (0) target = $region29
    $region28: #{tpu_custom_call.1} parent=1 // pred_region
      %s1050 = ssub.s32 16, 16
      %1051 = vsyncadd [#allocation4], %s1050
      %s1053 = sshll.u32 [#allocation3], 4
      %s1054 = int_to_ptr.vmem [resolvable:$true] %s1053
      %1056 = dma.vmem_to_hbm [thread:$0]  %s1054, 16, %s6, [#allocation4]
    $region29: #{tpu_custom_call.1} parent=1 // pred_fallthru
      _
    // Predicated region
    $region30: #{tpu_custom_call.1} parent=1 // pred_check
      _
    $region31: #{tpu_custom_call.1} parent=1 // pred_check_branch
      %1058 = sbr.rel (0) target = $region33
    $region32: #{tpu_custom_call.1} parent=1 // pred_region
      %1059 = dma.done [#allocation4], 16
    $region33: #{tpu_custom_call.1} parent=1 // pred_fallthru
      _
    %1060 = vsyncpa [#allocation4], 1

</llo_original>
